<compile_context>
chip_gen: v7x
topology: tpu7x:2x2x1
jax: 0.10.0
libtpu: 0.0.40
codegen_flags: <defaults>
</compile_context>

<pallas_src>
import math

import jax
import jax.numpy as jnp
from jax.experimental import pallas as pl
from jax.experimental.pallas import tpu as pltpu


def _round_up(x, m):
    return ((x + m - 1) // m) * m


def _vmem_bytes(tile_m, K, cout):
    return (2 * tile_m * K * 2        # patches tile, bf16, double-buffered
            + K * cout * 2            # weight, bf16, single-buffered
            + 2 * cout * 4            # bias + alpha rows, f32, single-buffered
            + 2 * tile_m * cout * 4)  # output tile, f32, double-buffered


def _pick_tile_m(M, K, cout, target, budget=40 << 20):
    """Largest M-tile that (a) fits the VMEM budget, (b) leaves >=2 grid steps when
    possible (v7x megacore), and (c) divides M exactly (avoids a padding copy)."""
    t = max(16, min(_round_up(target, 16), _round_up(M, 16)))
    while t > 16 and _vmem_bytes(t, K, cout) > budget:
        t = max(16, t // 2)
    if M >= 32:
        t = min(t, max(16, (M // 2) // 16 * 16))
    for cand in range(min(t, M), 15, -1):      # prefer an exact divisor of M
        if M % cand == 0 and cand % 16 == 0:
            return cand
    return t                                   # fallback; caller pads M


# ----------------------------- Pallas kernel --------------------------------
def _conv_prelu_kernel(p_ref, w_ref, b_ref, a_ref, o_ref):
    """One M-tile of fused Conv2d (im2col matmul) + bias + PReLU.

    p_ref: (TILE_M, K)    bf16 im2col patch rows for this tile
    w_ref: (K, COUT)      bf16 conv weight as matmul operand (resident)
    b_ref: (1, COUT)      f32 bias row (resident)
    a_ref: (1, COUT)      f32 PReLU negative slope per channel (resident)
    o_ref: (TILE_M, COUT) f32 fused output tile
    """
    y = jnp.dot(p_ref[...], w_ref[...], preferred_element_type=jnp.float32)  # MXU, f32 acc
    y = y + b_ref[...]
    # PReLU: y if y >= 0 else alpha * y   (VPU select)
    o_ref[...] = jnp.where(y >= 0.0, y, a_ref[...] * y)


# ------------------------------ host wrapper ---------------------------------
def conv_prelu(x, weight, bias, prelu_alpha, *, stride=1, padding=1, tile_m=1024):
    """x: (N, Cin, H, W) f32; weight: (Cout, Cin, KH, KW) f32 (PyTorch Conv2d layout);
    bias: (Cout,); prelu_alpha: (1,) or (Cout,).  Returns NCHW f32."""
    N, Cin, H, W = x.shape
    Cout, Cin_w, KH, KW = weight.shape
    assert Cin == Cin_w, "groups != 1 not supported"
    OH = (H + 2 * padding - KH) // stride + 1
    OW = (W + 2 * padding - KW) // stride + 1
    M = N * OH * OW
    K = Cin * KH * KW

    # --- im2col, channel-last so the (M, K) reshape is a pure view; bf16 halves HBM traffic.
    x_nhwc = jnp.transpose(x, (0, 2, 3, 1)).astype(jnp.bfloat16)
    patches = jax.lax.conv_general_dilated_patches(
        x_nhwc,
        filter_shape=(KH, KW),
        window_strides=(stride, stride),
        padding=[(padding, padding), (padding, padding)],
        dimension_numbers=("NHWC", "HWIO", "NHWC"),
    )                                   # (N, OH, OW, K), feature = ci*KH*KW + kh*KW + kw
    patches = patches.reshape(M, K)

    # weight -> (K, Cout) in the same feature order (bf16); bias / PReLU slope stay f32.
    w_mat = jnp.transpose(weight, (1, 2, 3, 0)).reshape(K, Cout).astype(jnp.bfloat16)
    b_row = bias.reshape(1, Cout).astype(jnp.float32)
    a_row = jnp.broadcast_to(prelu_alpha.reshape(1, -1).astype(jnp.float32), (1, Cout))

    tile_m = _pick_tile_m(M, K, Cout, tile_m)
    m_pad = _round_up(M, tile_m)
    if m_pad != M:            # fallback only; _pick_tile_m normally returns a divisor of M
        patches = jnp.pad(patches, ((0, m_pad - M), (0, 0)))
    grid_m = m_pad // tile_m

    vmem_need = _vmem_bytes(tile_m, K, Cout)
    vmem_limit = min(max(int(vmem_need * 1.5) + (4 << 20), 16 << 20), 48 << 20)

    cost = pl.CostEstimate(
        flops=2 * m_pad * K * Cout,
        transcendentals=0,
        bytes_accessed=m_pad * K * 2 + K * Cout * 2 + 2 * Cout * 4 + m_pad * Cout * 4,
    )

    resident = dict(pipeline_mode=pl.Buffered(1))   # loop-invariant blocks: no double-buffer
    out_flat = pl.pallas_call(
        _conv_prelu_kernel,
        out_shape=jax.ShapeDtypeStruct((m_pad, Cout), jnp.float32),
        grid_spec=pltpu.PrefetchScalarGridSpec(
            num_scalar_prefetch=0,
            grid=(grid_m,),
            in_specs=[
                pl.BlockSpec((tile_m, K), lambda i: (i, 0)),             # patches tile
                pl.BlockSpec((K, Cout), lambda i: (0, 0), **resident),   # weights (resident)
                pl.BlockSpec((1, Cout), lambda i: (0, 0), **resident),   # bias (resident)
                pl.BlockSpec((1, Cout), lambda i: (0, 0), **resident),   # PReLU slope
            ],
            out_specs=pl.BlockSpec((tile_m, Cout), lambda i: (i, 0)),
        ),
        compiler_params=pltpu.CompilerParams(
            dimension_semantics=("parallel",),      # independent M tiles -> megacore split
            vmem_limit_bytes=vmem_limit,
        ),
        cost_estimate=cost,
    )(patches, w_mat, b_row, a_row)

    # Back to NCHW (PyTorch output layout); output is small vs the im2col intermediate.
    out = out_flat[:M].reshape(N, OH, OW, Cout)
    return jnp.transpose(out, (0, 3, 1, 2))


# --------------------------- pure-JAX reference ------------------------------
def _reference(x, weight, bias, prelu_alpha, *, stride, padding):
    y = jax.lax.conv_general_dilated(
        x, weight,
        window_strides=(stride, stride),
        padding=[(padding, padding), (padding, padding)],
        dimension_numbers=("NCHW", "OIHW", "NCHW"),
        precision=jax.lax.Precision.HIGHEST,
    )
    y = y + bias[None, :, None, None]
    if prelu_alpha.size == weight.shape[0]:
        a = prelu_alpha.reshape(1, -1, 1, 1)
    else:
        a = prelu_alpha.reshape(1, 1, 1, 1)
    return jnp.where(y >= 0.0, y, a * y)


if __name__ == "__main__":
    # ConvPReLU(4, 8, kernel_size=3, stride=1, padding=1) at small shapes
    N, Cin, Cout, H, W = 2, 4, 8, 16, 16
    KSZ, STRIDE, PAD = 3, 1, 1

    key = jax.random.PRNGKey(0)
    kx, kw = jax.random.split(key)
    x = jax.random.normal(kx, (N, Cin, H, W), dtype=jnp.float32)

    # _init_weights: conv weight ~ N(0, sqrt(2 / (kh*kw*out_channels))), bias zeroed
    std = math.sqrt(2.0 / (KSZ * KSZ * Cout))
    weight = jax.random.normal(kw, (Cout, Cin, KSZ, KSZ), dtype=jnp.float32) * std
    bias = jnp.zeros((Cout,), jnp.float32)
    # nn.PReLU() default: a single shared negative slope initialized to 0.25
    alpha = jnp.full((1,), 0.25, jnp.float32)

    # M = 2*16*16 = 512 rows -> tile_m=256, 2 grid steps (exercises pipeline + megacore)
    out = jax.block_until_ready(
        conv_prelu(x, weight, bias, alpha, stride=STRIDE, padding=PAD)
    )
    ref = jax.block_until_ready(
        _reference(x, weight, bias, alpha, stride=STRIDE, padding=PAD)
    )

    assert out.shape == (N, Cout, H, W)
    # bf16 operands / f32 accumulation -> slightly looser tolerance than an all-f32 path
    max_err = float(jnp.max(jnp.abs(out - ref)))
    assert jnp.allclose(out, ref, rtol=2e-2, atol=2e-2), max_err
    print("KERNEL_OK")
</pallas_src>

<mosaic_0001>
module attributes {stable_mosaic.version = 11 : i64} {
  func.func @_conv_prelu_kernel(%arg0: i32, %arg1: memref<256x36xbf16, #tpu.memory_space<vmem>>, %arg2: memref<36x8xbf16, #tpu.memory_space<vmem>>, %arg3: memref<1x8xf32, #tpu.memory_space<vmem>>, %arg4: memref<1x8xf32, #tpu.memory_space<vmem>>, %arg5: memref<256x8xf32, #tpu.memory_space<vmem>>) attributes {dimension_semantics = [#tpu.dimension_semantics<parallel>], iteration_bounds = array<i64: 2>, scalar_prefetch = 0 : i64, scratch_operands = 0 : i64, tpu.core_type = #tpu.core_type<tc>, window_params = [{transform_indices = @transform_0, window_bounds = array<i64: 256, 36>}, {pipeline_mode = #tpu.pipeline_mode<synchronous>, transform_indices = @transform_1, window_bounds = array<i64: 36, 8>}, {pipeline_mode = #tpu.pipeline_mode<synchronous>, transform_indices = @transform_2, window_bounds = array<i64: 1, 8>}, {pipeline_mode = #tpu.pipeline_mode<synchronous>, transform_indices = @transform_3, window_bounds = array<i64: 1, 8>}, {transform_indices = @transform_4, window_bounds = array<i64: 256, 8>}]} {
    %c0 = arith.constant 0 : index
    %c0_0 = arith.constant 0 : index
    %0 = vector.load %arg1[%c0, %c0_0] : memref<256x36xbf16, #tpu.memory_space<vmem>>, vector<256x36xbf16>
    %c0_1 = arith.constant 0 : index
    %c0_2 = arith.constant 0 : index
    %1 = vector.load %arg2[%c0_1, %c0_2] : memref<36x8xbf16, #tpu.memory_space<vmem>>, vector<36x8xbf16>
    %cst = arith.constant dense<0.000000e+00> : vector<256x8xf32>
    %2 = tpu.matmul %0, %1, %cst {dimension_numbers = #tpu.dot_dimension_numbers<[1], [0], [0], [1], [0, 0, 1, 1], [], []>} : vector<256x36xbf16>, vector<36x8xbf16>, vector<256x8xf32> -> vector<256x8xf32>
    %c0_3 = arith.constant 0 : index
    %c0_4 = arith.constant 0 : index
    %3 = vector.load %arg3[%c0_3, %c0_4] : memref<1x8xf32, #tpu.memory_space<vmem>>, vector<1x8xf32>
    %4 = vector.broadcast %3 : vector<1x8xf32> to vector<256x8xf32>
    %5 = arith.addf %2, %4 : vector<256x8xf32>
    %cst_5 = arith.constant 0.000000e+00 : f32
    %6 = vector.broadcast %cst_5 : f32 to vector<256x8xf32>
    %7 = arith.cmpf oge, %5, %6 : vector<256x8xf32>
    %c0_6 = arith.constant 0 : index
    %c0_7 = arith.constant 0 : index
    %8 = vector.load %arg4[%c0_6, %c0_7] : memref<1x8xf32, #tpu.memory_space<vmem>>, vector<1x8xf32>
    %9 = vector.broadcast %8 : vector<1x8xf32> to vector<256x8xf32>
    %10 = arith.mulf %9, %5 : vector<256x8xf32>
    %11 = arith.select %7, %5, %10 : vector<256x8xi1>, vector<256x8xf32>
    %c0_8 = arith.constant 0 : index
    %c0_9 = arith.constant 0 : index
    %12 = vector.load %arg5[%c0_8, %c0_9] : memref<256x8xf32, #tpu.memory_space<vmem>>, vector<256x8xf32>
    tpu.vector_store %arg5[%c0_8, %c0_9], %11 {strides = array<i32>} : memref<256x8xf32, #tpu.memory_space<vmem>>, vector<256x8xf32>,
    return
  }
  func.func @transform_0(%arg0: i32) -> (i32, i32) {
    %c0_i32 = arith.constant 0 : i32
    %c0_i32_0 = arith.constant 0 : i32
    return %arg0, %c0_i32 : i32, i32
  }
  func.func @transform_1(%arg0: i32) -> (i32, i32) {
    %c0_i32 = arith.constant 0 : i32
    %c0_i32_0 = arith.constant 0 : i32
    %c0_i32_1 = arith.constant 0 : i32
    return %c0_i32, %c0_i32_0 : i32, i32
  }
  func.func @transform_2(%arg0: i32) -> (i32, i32) {
    %c0_i32 = arith.constant 0 : i32
    %c0_i32_0 = arith.constant 0 : i32
    %c0_i32_1 = arith.constant 0 : i32
    return %c0_i32, %c0_i32_0 : i32, i32
  }
  func.func @transform_3(%arg0: i32) -> (i32, i32) {
    %c0_i32 = arith.constant 0 : i32
    %c0_i32_0 = arith.constant 0 : i32
    %c0_i32_1 = arith.constant 0 : i32
    return %c0_i32, %c0_i32_0 : i32, i32
  }
  func.func @transform_4(%arg0: i32) -> (i32, i32) {
    %c0_i32 = arith.constant 0 : i32
    %c0_i32_0 = arith.constant 0 : i32
    return %arg0, %c0_i32 : i32, i32
  }
}

</mosaic_0001>

<llo_original>
// kernel: tpu_custom_call.1
$region0: #{tpu_custom_call.1}
  #allocation0 [shape = 'u32[]', space=smem, size = 0x4, offset = 0x4, fixed_abs, tag = 'smem constant byte address 0x4 - core index']
  #allocation1 [shape = 'u32[144,128]{1,0:T(1,128)}', space=vmem, size = 0x12000, scoped, tag = 'internal scratch']
  %s0 = inlined_call_operand.vmem [shape: bf16[512,36], index: 0, kind: input, shape index: {}]
  %s1 = inlined_call_operand.vmem [shape: bf16[36,8], index: 1, kind: input, shape index: {}]
  %s2 = inlined_call_operand.vmem [shape: f32[1,8], index: 2, kind: input, shape index: {}]
  %s3 = inlined_call_operand.vmem [shape: f32[1,8], index: 3, kind: input, shape index: {}]
  %s4 = inlined_call_operand.vmem [shape: f32[512,8], index: 4, kind: output, shape index: {}]
  %s5 = sld [smem:[#allocation0]]
  $region49: #{tpu_custom_call.1} parent=0
    _
  %s7 = ssub.s32 1, %s5
  %s8 = scalar_select 0, %s7, %s5
  loop: start=0, step=1, limit=4
  $region2: #{tpu_custom_call.1} parent=0 // loop_pre_header
    _
  $region3: #{tpu_custom_call.1} parent=0 // loop_header
    %s10 = sphi 0, %s14
    %p11 = scmp.ge.s32.totalorder %s10, 4
    %s20 = sphi 0, %s22
    %s23 = sphi 0, %s20
    %s24 = sphi 0, %s23
    %s40 = sphi 0, %s24
    %s44 = sphi 0, %s44
    %s46 = sphi 0, %s44
    %s47 = sphi 0, %s46
    %s61 = sphi 0, %s47
    %s65 = sphi 0, %s65
    %s67 = sphi 0, %s65
    %s68 = sphi 0, %s67
    %s82 = sphi 0, %s68
    %s86 = sphi 0, %s86
    %s88 = sphi 0, %s86
    %s89 = sphi 0, %s88
    %s103 = sphi 0, %s89
    %s109 = sphi 0, %s111
    %s112 = sphi 0, %s109
    %s113 = sphi 0, %s112
    %s129 = sphi 0, %s113
  $region4: #{tpu_custom_call.1} parent=0 // loop_header_branch
    %13 = sbr.rel (%p11) target = $region8
  $region5: #{tpu_custom_call.1} parent=0 // loop_body
    %s15 = ssub.s32 %s10, 1
    %s16 = ssub.s32 %s10, 2
    %s17 = sadd.s32 %s10, 1
    %s18 = ssub.s32 %s10, %s17
    %p19 = scmp.eq.s32.totalorder %s18, 0
    %s21 = sadd.s32 %s20, 1
    %s22 = scalar_select %p19, %s20, %s21
    %p25 = pneg %p19
    %p26 = scmp.eq.s32.totalorder %s10, 1
    %p27 = por %p25, %p26
    %p28 = scmp.ne.s32.totalorder %s20, %s23
    %p29 = scmp.eq.s32.totalorder %s10, 0
    %p30 = por %p28, %p29
    %p31 = scmp.ne.s32.totalorder %s20, %s23
    %p32 = scmp.eq.s32.totalorder %s15, 1
    %p33 = por %p31, %p32
    %p34 = scmp.ne.s32.totalorder %s23, %s24
    %p35 = scmp.eq.s32.totalorder %s15, 0
    %p36 = por %p34, %p35
    %p37 = scmp.ne.s32.totalorder %s23, %s24
    %p38 = scmp.eq.s32.totalorder %s16, 1
    %p39 = por %p37, %p38
    %p41 = scmp.ne.s32.totalorder %s24, %s40
    %p42 = scmp.eq.s32.totalorder %s16, 0
    %p43 = por %p41, %p42
    %s45 = sadd.s32 %s44, 1
    %p48 = scmp.eq.s32.totalorder %s10, 1
    %p49 = scmp.ne.s32.totalorder %s44, %s46
    %p50 = scmp.eq.s32.totalorder %s10, 0
    %p51 = por %p49, %p50
    %p52 = scmp.ne.s32.totalorder %s44, %s46
    %p53 = scmp.eq.s32.totalorder %s15, 1
    %p54 = por %p52, %p53
    %p55 = scmp.ne.s32.totalorder %s46, %s47
    %p56 = scmp.eq.s32.totalorder %s15, 0
    %p57 = por %p55, %p56
    %p58 = scmp.ne.s32.totalorder %s46, %s47
    %p59 = scmp.eq.s32.totalorder %s16, 1
    %p60 = por %p58, %p59
    %p62 = scmp.ne.s32.totalorder %s47, %s61
    %p63 = scmp.eq.s32.totalorder %s16, 0
    %p64 = por %p62, %p63
    %s66 = sadd.s32 %s65, 1
    %p69 = scmp.eq.s32.totalorder %s10, 1
    %p70 = scmp.ne.s32.totalorder %s65, %s67
    %p71 = scmp.eq.s32.totalorder %s10, 0
    %p72 = por %p70, %p71
    %p73 = scmp.ne.s32.totalorder %s65, %s67
    %p74 = scmp.eq.s32.totalorder %s15, 1
    %p75 = por %p73, %p74
    %p76 = scmp.ne.s32.totalorder %s67, %s68
    %p77 = scmp.eq.s32.totalorder %s15, 0
    %p78 = por %p76, %p77
    %p79 = scmp.ne.s32.totalorder %s67, %s68
    %p80 = scmp.eq.s32.totalorder %s16, 1
    %p81 = por %p79, %p80
    %p83 = scmp.ne.s32.totalorder %s68, %s82
    %p84 = scmp.eq.s32.totalorder %s16, 0
    %p85 = por %p83, %p84
    %s87 = sadd.s32 %s86, 1
    %p90 = scmp.eq.s32.totalorder %s10, 1
    %p91 = scmp.ne.s32.totalorder %s86, %s88
    %p92 = scmp.eq.s32.totalorder %s10, 0
    %p93 = por %p91, %p92
    %p94 = scmp.ne.s32.totalorder %s86, %s88
    %p95 = scmp.eq.s32.totalorder %s15, 1
    %p96 = por %p94, %p95
    %p97 = scmp.ne.s32.totalorder %s88, %s89
    %p98 = scmp.eq.s32.totalorder %s15, 0
    %p99 = por %p97, %p98
    %p100 = scmp.ne.s32.totalorder %s88, %s89
    %p101 = scmp.eq.s32.totalorder %s16, 1
    %p102 = por %p100, %p101
    %p104 = scmp.ne.s32.totalorder %s89, %s103
    %p105 = scmp.eq.s32.totalorder %s16, 0
    %p106 = por %p104, %p105
    %s107 = ssub.s32 %s10, %s17
    %p108 = scmp.eq.s32.totalorder %s107, 0
    %s110 = sadd.s32 %s109, 1
    %s111 = scalar_select %p108, %s109, %s110
    %p114 = pneg %p108
    %p115 = scmp.eq.s32.totalorder %s10, 1
    %p116 = por %p114, %p115
    %p117 = scmp.ne.s32.totalorder %s109, %s112
    %p118 = scmp.eq.s32.totalorder %s10, 0
    %p119 = por %p117, %p118
    %p120 = scmp.ne.s32.totalorder %s109, %s112
    %p121 = scmp.eq.s32.totalorder %s15, 1
    %p122 = por %p120, %p121
    %p123 = scmp.ne.s32.totalorder %s112, %s113
    %p124 = scmp.eq.s32.totalorder %s15, 0
    %p125 = por %p123, %p124
    %p126 = scmp.ne.s32.totalorder %s112, %s113
    %p127 = scmp.eq.s32.totalorder %s16, 1
    %p128 = por %p126, %p127
    %p130 = scmp.ne.s32.totalorder %s113, %s129
    %p131 = scmp.eq.s32.totalorder %s16, 0
    %p132 = por %p130, %p131
    %p133 = scmp.le.s32.totalorder 1, %s10
    %p134 = scmp.lt.s32.totalorder %s10, 3
    %p135 = pnand %p133, %p134
    %p136 = pneg %p135
    // Predicated region
    $region9: #{tpu_custom_call.1} parent=5 // pred_check
      _
    $region10: #{tpu_custom_call.1} parent=5 // pred_check_branch
      %138 = sbr.rel (%p135) target = $region12
    $region11: #{tpu_custom_call.1} parent=5 // pred_region
      %s139 = ssub.s32 %s10, 1
      // Predicated region
      $region13: #{tpu_custom_call.1} parent=11 // pred_check
        %p140 = pneg %p57
      $region14: #{tpu_custom_call.1} parent=11 // pred_check_branch
        %142 = sbr.rel (%p140) target = $region16
      $region15: #{tpu_custom_call.1} parent=11 // pred_region
        _
      $region16: #{tpu_custom_call.1} parent=11 // pred_fallthru
        _
      // Predicated region
      $region17: #{tpu_custom_call.1} parent=11 // pred_check
        %p143 = pneg %p78
      $region18: #{tpu_custom_call.1} parent=11 // pred_check_branch
        %145 = sbr.rel (%p143) target = $region20
      $region19: #{tpu_custom_call.1} parent=11 // pred_region
        _
      $region20: #{tpu_custom_call.1} parent=11 // pred_fallthru
        _
      // Predicated region
      $region21: #{tpu_custom_call.1} parent=11 // pred_check
        %p146 = pneg %p99
      $region22: #{tpu_custom_call.1} parent=11 // pred_check_branch
        %148 = sbr.rel (%p146) target = $region24
      $region23: #{tpu_custom_call.1} parent=11 // pred_region
        _
      $region24: #{tpu_custom_call.1} parent=11 // pred_fallthru
        _
    $region12: #{tpu_custom_call.1} parent=5 // pred_fallthru
      _
    %p149 = scmp.lt.s32.totalorder %s10, 2
    // Predicated region
    $region25: #{tpu_custom_call.1} parent=5 // pred_check
      %p150 = pneg %p149
    $region26: #{tpu_custom_call.1} parent=5 // pred_check_branch
      %152 = sbr.rel (%p150) target = $region28
    $region27: #{tpu_custom_call.1} parent=5 // pred_region
      // Predicated region
      $region29: #{tpu_custom_call.1} parent=27 // pred_check
        %p153 = pneg %p30
      $region30: #{tpu_custom_call.1} parent=27 // pred_check_branch
        %155 = sbr.rel (%p153) target = $region32
      $region31: #{tpu_custom_call.1} parent=27 // pred_region
        %s156 = smul.u32 32, %s10
        %p157 = scmp.lt.s32.totalorder %s156, 63
        %s158 = scalar_select %p157, %s156, 63
        %s159 = smul.addr %s158, 4
        %s160 = scalar_lea.vmem %s0, %s159
        %s161 = smul.u32 32, %s10
      $region32: #{tpu_custom_call.1} parent=27 // pred_fallthru
        _
    $region28: #{tpu_custom_call.1} parent=5 // pred_fallthru
      _
    %p162 = scmp.le.s32.totalorder 1, %s10
    %p163 = scmp.lt.s32.totalorder %s10, 3
    %p164 = pnand %p162, %p163
    %p165 = pneg %p164
    // Predicated region
    $region33: #{tpu_custom_call.1} parent=5 // pred_check
      _
    $region34: #{tpu_custom_call.1} parent=5 // pred_check_branch
      %167 = sbr.rel (%p164) target = $region36
    $region35: #{tpu_custom_call.1} parent=5 // pred_region
      %s168 = ssub.s32 %s10, 1
      %s169 = smul.u32 32, %s15
      %p170 = scmp.lt.s32.totalorder %s169, 63
      %s171 = scalar_select %p170, %s169, 63
      %s172 = smul.addr %s171, 4
      %s173 = scalar_lea.vmem %s0, %s172
      %p174 = pneg %p36
      %p175 = pneg %p33
      %p176 = pneg %p57
      %p177 = pneg %p54
      %p178 = pneg %p78
      %p179 = pneg %p75
      %p180 = pneg %p99
      %p181 = pneg %p96
      %p182 = pneg %p125
      %p183 = pneg %p122
      %s184 = smul.u32 32, %s15
      %p185 = scmp.lt.s32.totalorder %s184, 63
      %s186 = scalar_select %p185, %s184, 63
      %s187 = smul.addr %s186, 8
      %s188 = scalar_lea.vmem %s4, %s187
      %s189 = smul.u32 32, %s15
      %p190 = scmp.lt.s32.totalorder %s189, 63
      %s191 = scalar_select %p190, %s189, 63
      %s192 = smul.addr %s191, 4
      %s193 = scalar_lea.vmem %s0, %s192
      %s194 = smul.u32 32, %s15
      %s195 = smul.u32 32, %s15
      %p196 = scmp.lt.s32.totalorder %s195, 63
      %s197 = scalar_select %p196, %s195, 63
      %s198 = smul.addr %s197, 8
      %s199 = scalar_lea.vmem %s4, %s198
      %s200 = smul.u32 32, %s15
      %v202 = vld [vmem:[%s193] sm:$0xf]
      %v203 = vld [vmem:[%s193 + $0x4] sm:$0xf]
      %v204 = vld [vmem:[%s193 + $0x8] sm:$0xf]
      %v205 = vld [vmem:[%s193 + $0xc] sm:$0xf]
      %v206 = vld [vmem:[%s193 + $0x10] sm:$0xf]
      %v207 = vld [vmem:[%s193 + $0x14] sm:$0xf]
      %v208 = vld [vmem:[%s193 + $0x18] sm:$0xf]
      %v209 = vld [vmem:[%s193 + $0x1c] sm:$0xf]
      %v210 = vld [vmem:[%s193 + $0x20] sm:$0xf]
      %v211 = vld [vmem:[%s193 + $0x24] sm:$0xf]
      %v212 = vld [vmem:[%s193 + $0x28] sm:$0xf]
      %v213 = vld [vmem:[%s193 + $0x2c] sm:$0xf]
      %v214 = vld [vmem:[%s193 + $0x30] sm:$0xf]
      %v215 = vld [vmem:[%s193 + $0x34] sm:$0xf]
      %v216 = vld [vmem:[%s193 + $0x38] sm:$0xf]
      %v217 = vld [vmem:[%s193 + $0x3c] sm:$0xf]
      %v218 = vld [vmem:[%s193 + $0x40] sm:$0xf]
      %v219 = vld [vmem:[%s193 + $0x44] sm:$0xf]
      %v220 = vld [vmem:[%s193 + $0x48] sm:$0xf]
      %v221 = vld [vmem:[%s193 + $0x4c] sm:$0xf]
      %v222 = vld [vmem:[%s193 + $0x50] sm:$0xf]
      %v223 = vld [vmem:[%s193 + $0x54] sm:$0xf]
      %v224 = vld [vmem:[%s193 + $0x58] sm:$0xf]
      %v225 = vld [vmem:[%s193 + $0x5c] sm:$0xf]
      %v226 = vld [vmem:[%s193 + $0x60] sm:$0xf]
      %v227 = vld [vmem:[%s193 + $0x64] sm:$0xf]
      %v228 = vld [vmem:[%s193 + $0x68] sm:$0xf]
      %v229 = vld [vmem:[%s193 + $0x6c] sm:$0xf]
      %v230 = vld [vmem:[%s193 + $0x70] sm:$0xf]
      %v231 = vld [vmem:[%s193 + $0x74] sm:$0xf]
      %v232 = vld [vmem:[%s193 + $0x78] sm:$0xf]
      %v233 = vld [vmem:[%s193 + $0x7c] sm:$0xf]
      %v234 = vld [vmem:[%s1] sm:$0xf]
      %v235 = vld [vmem:[%s1 + $0x4] sm:$0xf]
      %v236 = vld [vmem:[%s1 + $0x8] sm:$0xf]
      %v237 = vld [vmem:[%s1 + $0xc] sm:$0xf]
      %v238 = vld [vmem:[%s1 + $0x10] sm:$0x3]
      %v239 = vld [vmem:[%s2] sm:$0x1]
      %v241 = vlaneseq
      %v242 = vshrl.u32 %v241, 7
      %v243 = vsub.s32 0, %v242
      %v244 = vrot.slane %v239, %v243
      %v278 = vunpack.c.l.b16 %v202
      %v279 = vunpack.c.l.b16 %v203
      %v280 = vunpack.c.l.b16 %v204
      %v281 = vunpack.c.l.b16 %v205
      %v282 = vunpack.c.l.b16 %v206
      %v283 = vunpack.c.l.b16 %v207
      %v284 = vunpack.c.l.b16 %v208
      %v285 = vunpack.c.l.b16 %v209
      %v286 = vunpack.c.l.b16 %v210
      %v287 = vunpack.c.l.b16 %v211
      %v288 = vunpack.c.l.b16 %v212
      %v289 = vunpack.c.l.b16 %v213
      %v290 = vunpack.c.l.b16 %v214
      %v291 = vunpack.c.l.b16 %v215
      %v292 = vunpack.c.l.b16 %v216
      %v293 = vunpack.c.l.b16 %v217
      %v294 = vunpack.c.l.b16 %v218
      %v295 = vunpack.c.l.b16 %v219
      %v296 = vunpack.c.l.b16 %v220
      %v297 = vunpack.c.l.b16 %v221
      %v298 = vunpack.c.l.b16 %v222
      %v299 = vunpack.c.l.b16 %v223
      %v300 = vunpack.c.l.b16 %v224
      %v301 = vunpack.c.l.b16 %v225
      %v302 = vunpack.c.l.b16 %v226
      %v303 = vunpack.c.l.b16 %v227
      %v304 = vunpack.c.l.b16 %v228
      %v305 = vunpack.c.l.b16 %v229
      %v306 = vunpack.c.l.b16 %v230
      %v307 = vunpack.c.l.b16 %v231
      %v308 = vunpack.c.l.b16 %v232
      %v309 = vunpack.c.l.b16 %v233
      %v310 = vpack.c.b16 %v279, %v278
      %v311 = vpack.c.b16 %v281, %v280
      %v312 = vpack.c.b16 %v283, %v282
      %v313 = vpack.c.b16 %v285, %v284
      %v314 = vpack.c.b16 %v287, %v286
      %v315 = vpack.c.b16 %v289, %v288
      %v316 = vpack.c.b16 %v291, %v290
      %v317 = vpack.c.b16 %v293, %v292
      %v318 = vpack.c.b16 %v295, %v294
      %v319 = vpack.c.b16 %v297, %v296
      %v320 = vpack.c.b16 %v299, %v298
      %v321 = vpack.c.b16 %v301, %v300
      %v322 = vpack.c.b16 %v303, %v302
      %v323 = vpack.c.b16 %v305, %v304
      %v324 = vpack.c.b16 %v307, %v306
      %v325 = vpack.c.b16 %v309, %v308
      %v331 = vunpack.c.l.b16 %v234
      %v332 = vunpack.c.l.b16 %v235
      %v333 = vunpack.c.l.b16 %v236
      %v334 = vunpack.c.l.b16 %v237
      %v335 = vunpack.c.l.b16 %v238
      %v336 = vpack.c.b16 %v332, %v331
      %v337 = vpack.c.b16 %v334, %v333
      %v338 = vpack.c.b16 %v335, %v335
      %vm341 = vcmask 293888
      %v343 = vsel %vm341, %v310, 0
      %v346 = vsel %vm341, %v311, 0
      %v349 = vsel %vm341, %v312, 0
      %v352 = vsel %vm341, %v313, 0
      %v355 = vsel %vm341, %v314, 0
      %v358 = vsel %vm341, %v315, 0
      %v361 = vsel %vm341, %v316, 0
      %v364 = vsel %vm341, %v317, 0
      %v367 = vsel %vm341, %v318, 0
      %v370 = vsel %vm341, %v319, 0
      %v373 = vsel %vm341, %v320, 0
      %v376 = vsel %vm341, %v321, 0
      %v379 = vsel %vm341, %v322, 0
      %v382 = vsel %vm341, %v323, 0
      %v385 = vsel %vm341, %v324, 0
      %v388 = vsel %vm341, %v325, 0
      %vm390 = vcmask 1041408
      %v392 = vsel %vm390, %v338, 0
      %394 = vmatprep.subr.bf16.mxu0 0
      %395 = vmatpush1.bf16.msra.mxu0 %v336
      %396 = vmatprep.subr.bf16.mxu0 0
      %397 = vmatpush1.bf16.msra.mxu0 %v337
      %398 = vmatprep.subr.bf16.mxu0 0
      %399 = vmatpush1.bf16.msra.mxu0 %v392
      %400 = vmatprep.subr.bf16.mxu0 0
      %401 = vmatpush1.bf16.msra.mxu0 0
      %402 = vmatprep.subr.bf16.mxu0 0
      %403 = vmatpush1.bf16.msra.mxu0 0
      %404 = vmatprep.subr.bf16.mxu0 0
      %405 = vmatpush1.bf16.msra.mxu0 0
      %406 = vmatprep.subr.bf16.mxu0 0
      %407 = vmatpush1.bf16.msra.mxu0 0
      %408 = vmatprep.subr.bf16.mxu0 0
      %409 = vmatpush1.bf16.msra.mxu0 0
      %410 = vmatprep.subr.bf16.mxu0 0
      %411 = vmatpush1.bf16.msra.mxu0 0
      %412 = vmatprep.subr.bf16.mxu0 0
      %413 = vmatpush1.bf16.msra.mxu0 0
      %414 = vmatprep.subr.bf16.mxu0 0
      %415 = vmatpush1.bf16.msra.mxu0 0
      %416 = vmatprep.subr.bf16.mxu0 0
      %417 = vmatpush1.bf16.msra.mxu0 0
      %418 = vmatprep.subr.bf16.mxu0 0
      %419 = vmatpush1.bf16.msra.mxu0 0
      %420 = vmatprep.subr.bf16.mxu0 0
      %421 = vmatpush1.bf16.msra.mxu0 0
      %422 = vmatprep.subr.bf16.mxu0 0
      %423 = vmatpush1.bf16.msra.mxu0 0
      %424 = vmatprep.subr.bf16.mxu0 0
      %425 = vmatpush1.bf16.msra.mxu0 0
      %426 = vmatprep.mubr.bf16.mxu0 0
      %427 = vmatmul.mubr.bf16.gmra.mrb[0].mxu0 %v343
      %v428 = vpop.f32.mrb[0].mxu0
      %v429 = vadd.f32 %v244, %v428
      %v430 = vpop.f32.mrb[0].mxu0
      %v431 = vpop.f32.mrb[0].mxu0
      %v432 = vadd.f32 %v244, %v431
      %v433 = vpop.f32.mrb[0].mxu0
      %434 = vmatprep.mubr.bf16.mxu0 0
      %435 = vmatmul.mubr.bf16.gmra.mrb[0].mxu0 %v346
      %v436 = vpop.f32.mrb[0].mxu0
      %v437 = vadd.f32 %v244, %v436
      %v438 = vpop.f32.mrb[0].mxu0
      %v439 = vpop.f32.mrb[0].mxu0
      %v440 = vadd.f32 %v244, %v439
      %v441 = vpop.f32.mrb[0].mxu0
      %442 = vmatprep.mubr.bf16.mxu0 0
      %443 = vmatmul.mubr.bf16.gmra.mrb[0].mxu0 %v349
      %v444 = vpop.f32.mrb[0].mxu0
      %v445 = vadd.f32 %v244, %v444
      %v446 = vpop.f32.mrb[0].mxu0
      %v447 = vpop.f32.mrb[0].mxu0
      %v448 = vadd.f32 %v244, %v447
      %v449 = vpop.f32.mrb[0].mxu0
      %450 = vmatprep.mubr.bf16.mxu0 0
      %451 = vmatmul.mubr.bf16.gmra.mrb[0].mxu0 %v352
      %v452 = vpop.f32.mrb[0].mxu0
      %v453 = vadd.f32 %v244, %v452
      %v454 = vpop.f32.mrb[0].mxu0
      %v455 = vpop.f32.mrb[0].mxu0
      %v456 = vadd.f32 %v244, %v455
      %v457 = vpop.f32.mrb[0].mxu0
      %458 = vmatprep.mubr.bf16.mxu0 0
      %459 = vmatmul.mubr.bf16.gmra.mrb[0].mxu0 %v355
      %v460 = vpop.f32.mrb[0].mxu0
      %v461 = vadd.f32 %v244, %v460
      %v462 = vpop.f32.mrb[0].mxu0
      %v463 = vpop.f32.mrb[0].mxu0
      %v464 = vadd.f32 %v244, %v463
      %v465 = vpop.f32.mrb[0].mxu0
      %466 = vmatprep.mubr.bf16.mxu0 0
      %467 = vmatmul.mubr.bf16.gmra.mrb[0].mxu0 %v358
      %v468 = vpop.f32.mrb[0].mxu0
      %v469 = vadd.f32 %v244, %v468
      %v470 = vpop.f32.mrb[0].mxu0
      %v471 = vpop.f32.mrb[0].mxu0
      %v472 = vadd.f32 %v244, %v471
      %v473 = vpop.f32.mrb[0].mxu0
      %474 = vmatprep.mubr.bf16.mxu0 0
      %475 = vmatmul.mubr.bf16.gmra.mrb[0].mxu0 %v361
      %v476 = vpop.f32.mrb[0].mxu0
      %v477 = vadd.f32 %v244, %v476
      %v478 = vpop.f32.mrb[0].mxu0
      %v479 = vpop.f32.mrb[0].mxu0
      %v480 = vadd.f32 %v244, %v479
      %v481 = vpop.f32.mrb[0].mxu0
      %482 = vmatprep.mubr.bf16.mxu0 0
      %483 = vmatmul.mubr.bf16.gmra.mrb[0].mxu0 %v364
      %v484 = vpop.f32.mrb[0].mxu0
      %v485 = vadd.f32 %v244, %v484
      %v486 = vpop.f32.mrb[0].mxu0
      %v487 = vpop.f32.mrb[0].mxu0
      %v488 = vadd.f32 %v244, %v487
      %v489 = vpop.f32.mrb[0].mxu0
      %490 = vmatprep.mubr.bf16.mxu0 0
      %491 = vmatmul.mubr.bf16.gmra.mrb[0].mxu0 %v367
      %v492 = vpop.f32.mrb[0].mxu0
      %v493 = vadd.f32 %v244, %v492
      %v494 = vpop.f32.mrb[0].mxu0
      %v495 = vpop.f32.mrb[0].mxu0
      %v496 = vadd.f32 %v244, %v495
      %v497 = vpop.f32.mrb[0].mxu0
      %498 = vmatprep.mubr.bf16.mxu0 0
      %499 = vmatmul.mubr.bf16.gmra.mrb[0].mxu0 %v370
      %v500 = vpop.f32.mrb[0].mxu0
      %v501 = vadd.f32 %v244, %v500
      %v502 = vpop.f32.mrb[0].mxu0
      %v503 = vpop.f32.mrb[0].mxu0
      %v504 = vadd.f32 %v244, %v503
      %v505 = vpop.f32.mrb[0].mxu0
      %506 = vmatprep.mubr.bf16.mxu0 0
      %507 = vmatmul.mubr.bf16.gmra.mrb[0].mxu0 %v373
      %v508 = vpop.f32.mrb[0].mxu0
      %v509 = vadd.f32 %v244, %v508
      %v510 = vpop.f32.mrb[0].mxu0
      %v511 = vpop.f32.mrb[0].mxu0
      %v512 = vadd.f32 %v244, %v511
      %v513 = vpop.f32.mrb[0].mxu0
      %514 = vmatprep.mubr.bf16.mxu0 0
      %515 = vmatmul.mubr.bf16.gmra.mrb[0].mxu0 %v376
      %v516 = vpop.f32.mrb[0].mxu0
      %v517 = vadd.f32 %v244, %v516
      %v518 = vpop.f32.mrb[0].mxu0
      %v519 = vpop.f32.mrb[0].mxu0
      %v520 = vadd.f32 %v244, %v519
      %v521 = vpop.f32.mrb[0].mxu0
      %522 = vmatprep.mubr.bf16.mxu0 0
      %523 = vmatmul.mubr.bf16.gmra.mrb[0].mxu0 %v379
      %v524 = vpop.f32.mrb[0].mxu0
      %v525 = vadd.f32 %v244, %v524
      %v526 = vpop.f32.mrb[0].mxu0
      %v527 = vpop.f32.mrb[0].mxu0
      %v528 = vadd.f32 %v244, %v527
      %v529 = vpop.f32.mrb[0].mxu0
      %530 = vmatprep.mubr.bf16.mxu0 0
      %531 = vmatmul.mubr.bf16.gmra.mrb[0].mxu0 %v382
      %v532 = vpop.f32.mrb[0].mxu0
      %v533 = vadd.f32 %v244, %v532
      %v534 = vpop.f32.mrb[0].mxu0
      %v535 = vpop.f32.mrb[0].mxu0
      %v536 = vadd.f32 %v244, %v535
      %v537 = vpop.f32.mrb[0].mxu0
      %538 = vmatprep.mubr.bf16.mxu0 0
      %539 = vmatmul.mubr.bf16.gmra.mrb[0].mxu0 %v385
      %v540 = vpop.f32.mrb[0].mxu0
      %v541 = vadd.f32 %v244, %v540
      %v542 = vpop.f32.mrb[0].mxu0
      %v543 = vpop.f32.mrb[0].mxu0
      %v544 = vadd.f32 %v244, %v543
      %v545 = vpop.f32.mrb[0].mxu0
      %546 = vmatprep.mubr.bf16.mxu0 0
      %547 = vmatmul.mubr.bf16.gmra.mrb[0].mxu0 %v388
      %v548 = vpop.f32.mrb[0].mxu0
      %v549 = vadd.f32 %v244, %v548
      %v550 = vpop.f32.mrb[0].mxu0
      %v551 = vpop.f32.mrb[0].mxu0
      %v552 = vadd.f32 %v244, %v551
      %v553 = vpop.f32.mrb[0].mxu0
      %554 = vdwg.mxu0
      %vm555 = vcmp.ge.f32.partialorder %v429, 0.0
      %vm556 = vcmp.ge.f32.partialorder %v432, 0.0
      %vm557 = vcmp.ge.f32.partialorder %v437, 0.0
      %vm558 = vcmp.ge.f32.partialorder %v440, 0.0
      %vm559 = vcmp.ge.f32.partialorder %v445, 0.0
      %vm560 = vcmp.ge.f32.partialorder %v448, 0.0
      %vm561 = vcmp.ge.f32.partialorder %v453, 0.0
      %vm562 = vcmp.ge.f32.partialorder %v456, 0.0
      %vm563 = vcmp.ge.f32.partialorder %v461, 0.0
      %vm564 = vcmp.ge.f32.partialorder %v464, 0.0
      %vm565 = vcmp.ge.f32.partialorder %v469, 0.0
      %vm566 = vcmp.ge.f32.partialorder %v472, 0.0
      %vm567 = vcmp.ge.f32.partialorder %v477, 0.0
      %vm568 = vcmp.ge.f32.partialorder %v480, 0.0
      %vm569 = vcmp.ge.f32.partialorder %v485, 0.0
      %vm570 = vcmp.ge.f32.partialorder %v488, 0.0
      %vm571 = vcmp.ge.f32.partialorder %v493, 0.0
      %vm572 = vcmp.ge.f32.partialorder %v496, 0.0
      %vm573 = vcmp.ge.f32.partialorder %v501, 0.0
      %vm574 = vcmp.ge.f32.partialorder %v504, 0.0
      %vm575 = vcmp.ge.f32.partialorder %v509, 0.0
      %vm576 = vcmp.ge.f32.partialorder %v512, 0.0
      %vm577 = vcmp.ge.f32.partialorder %v517, 0.0
      %vm578 = vcmp.ge.f32.partialorder %v520, 0.0
      %vm579 = vcmp.ge.f32.partialorder %v525, 0.0
      %vm580 = vcmp.ge.f32.partialorder %v528, 0.0
      %vm581 = vcmp.ge.f32.partialorder %v533, 0.0
      %vm582 = vcmp.ge.f32.partialorder %v536, 0.0
      %vm583 = vcmp.ge.f32.partialorder %v541, 0.0
      %vm584 = vcmp.ge.f32.partialorder %v544, 0.0
      %vm585 = vcmp.ge.f32.partialorder %v549, 0.0
      %vm586 = vcmp.ge.f32.partialorder %v552, 0.0
      %v587 = vld [vmem:[%s3] sm:$0x1]
      %v589 = vlaneseq
      %v590 = vshrl.u32 %v589, 7
      %v591 = vsub.s32 0, %v590
      %v592 = vrot.slane %v587, %v591
      %v594 = vmul.f32 %v592, %v429
      %v595 = vmul.f32 %v592, %v432
      %v596 = vmul.f32 %v592, %v437
      %v597 = vmul.f32 %v592, %v440
      %v598 = vmul.f32 %v592, %v445
      %v599 = vmul.f32 %v592, %v448
      %v600 = vmul.f32 %v592, %v453
      %v601 = vmul.f32 %v592, %v456
      %v602 = vmul.f32 %v592, %v461
      %v603 = vmul.f32 %v592, %v464
      %v604 = vmul.f32 %v592, %v469
      %v605 = vmul.f32 %v592, %v472
      %v606 = vmul.f32 %v592, %v477
      %v607 = vmul.f32 %v592, %v480
      %v608 = vmul.f32 %v592, %v485
      %v609 = vmul.f32 %v592, %v488
      %v610 = vmul.f32 %v592, %v493
      %v611 = vmul.f32 %v592, %v496
      %v612 = vmul.f32 %v592, %v501
      %v613 = vmul.f32 %v592, %v504
      %v614 = vmul.f32 %v592, %v509
      %v615 = vmul.f32 %v592, %v512
      %v616 = vmul.f32 %v592, %v517
      %v617 = vmul.f32 %v592, %v520
      %v618 = vmul.f32 %v592, %v525
      %v619 = vmul.f32 %v592, %v528
      %v620 = vmul.f32 %v592, %v533
      %v621 = vmul.f32 %v592, %v536
      %v622 = vmul.f32 %v592, %v541
      %v623 = vmul.f32 %v592, %v544
      %v624 = vmul.f32 %v592, %v549
      %v625 = vmul.f32 %v592, %v552
      %v626 = vsel %vm555, %v429, %v594
      %v627 = vsel %vm556, %v432, %v595
      %v628 = vsel %vm557, %v437, %v596
      %v629 = vsel %vm558, %v440, %v597
      %v630 = vsel %vm559, %v445, %v598
      %v631 = vsel %vm560, %v448, %v599
      %v632 = vsel %vm561, %v453, %v600
      %v633 = vsel %vm562, %v456, %v601
      %v634 = vsel %vm563, %v461, %v602
      %v635 = vsel %vm564, %v464, %v603
      %v636 = vsel %vm565, %v469, %v604
      %v637 = vsel %vm566, %v472, %v605
      %v638 = vsel %vm567, %v477, %v606
      %v639 = vsel %vm568, %v480, %v607
      %v640 = vsel %vm569, %v485, %v608
      %v641 = vsel %vm570, %v488, %v609
      %v642 = vsel %vm571, %v493, %v610
      %v643 = vsel %vm572, %v496, %v611
      %v644 = vsel %vm573, %v501, %v612
      %v645 = vsel %vm574, %v504, %v613
      %v646 = vsel %vm575, %v509, %v614
      %v647 = vsel %vm576, %v512, %v615
      %v648 = vsel %vm577, %v517, %v616
      %v649 = vsel %vm578, %v520, %v617
      %v650 = vsel %vm579, %v525, %v618
      %v651 = vsel %vm580, %v528, %v619
      %v652 = vsel %vm581, %v533, %v620
      %v653 = vsel %vm582, %v536, %v621
      %v654 = vsel %vm583, %v541, %v622
      %v655 = vsel %vm584, %v544, %v623
      %v656 = vsel %vm585, %v549, %v624
      %v657 = vsel %vm586, %v552, %v625
      %vm658 = vcmask 64512
      %659 = vst.msk [vmem:[%s199] sm:$0xff] %vm658, %v626
      %660 = vst.msk [vmem:[%s199 + $0x8] sm:$0xff] %vm658, %v627
      %661 = vst.msk [vmem:[%s199 + $0x10] sm:$0xff] %vm658, %v628
      %662 = vst.msk [vmem:[%s199 + $0x18] sm:$0xff] %vm658, %v629
      %663 = vst.msk [vmem:[%s199 + $0x20] sm:$0xff] %vm658, %v630
      %664 = vst.msk [vmem:[%s199 + $0x28] sm:$0xff] %vm658, %v631
      %665 = vst.msk [vmem:[%s199 + $0x30] sm:$0xff] %vm658, %v632
      %666 = vst.msk [vmem:[%s199 + $0x38] sm:$0xff] %vm658, %v633
      %667 = vst.msk [vmem:[%s199 + $0x40] sm:$0xff] %vm658, %v634
      %668 = vst.msk [vmem:[%s199 + $0x48] sm:$0xff] %vm658, %v635
      %669 = vst.msk [vmem:[%s199 + $0x50] sm:$0xff] %vm658, %v636
      %670 = vst.msk [vmem:[%s199 + $0x58] sm:$0xff] %vm658, %v637
      %671 = vst.msk [vmem:[%s199 + $0x60] sm:$0xff] %vm658, %v638
      %672 = vst.msk [vmem:[%s199 + $0x68] sm:$0xff] %vm658, %v639
      %673 = vst.msk [vmem:[%s199 + $0x70] sm:$0xff] %vm658, %v640
      %674 = vst.msk [vmem:[%s199 + $0x78] sm:$0xff] %vm658, %v641
      %675 = vst.msk [vmem:[%s199 + $0x80] sm:$0xff] %vm658, %v642
      %676 = vst.msk [vmem:[%s199 + $0x88] sm:$0xff] %vm658, %v643
      %677 = vst.msk [vmem:[%s199 + $0x90] sm:$0xff] %vm658, %v644
      %678 = vst.msk [vmem:[%s199 + $0x98] sm:$0xff] %vm658, %v645
      %679 = vst.msk [vmem:[%s199 + $0xa0] sm:$0xff] %vm658, %v646
      %680 = vst.msk [vmem:[%s199 + $0xa8] sm:$0xff] %vm658, %v647
      %681 = vst.msk [vmem:[%s199 + $0xb0] sm:$0xff] %vm658, %v648
      %682 = vst.msk [vmem:[%s199 + $0xb8] sm:$0xff] %vm658, %v649
      %683 = vst.msk [vmem:[%s199 + $0xc0] sm:$0xff] %vm658, %v650
      %684 = vst.msk [vmem:[%s199 + $0xc8] sm:$0xff] %vm658, %v651
      %685 = vst.msk [vmem:[%s199 + $0xd0] sm:$0xff] %vm658, %v652
      %686 = vst.msk [vmem:[%s199 + $0xd8] sm:$0xff] %vm658, %v653
      %687 = vst.msk [vmem:[%s199 + $0xe0] sm:$0xff] %vm658, %v654
      %688 = vst.msk [vmem:[%s199 + $0xe8] sm:$0xff] %vm658, %v655
      %689 = vst.msk [vmem:[%s199 + $0xf0] sm:$0xff] %vm658, %v656
      %690 = vst.msk [vmem:[%s199 + $0xf8] sm:$0xff] %vm658, %v657
      %s691 = smul.u32 32, %s15
      %p692 = scmp.lt.s32.totalorder %s691, 63
      %s693 = scalar_select %p692, %s691, 63
      %s694 = smul.addr %s693, 8
      %s695 = scalar_lea.vmem %s4, %s694
      // Predicated region
      $region37: #{tpu_custom_call.1} parent=35 // pred_check
        %p696 = pneg %p122
      $region38: #{tpu_custom_call.1} parent=35 // pred_check_branch
        %698 = sbr.rel (%p696) target = $region40
      $region39: #{tpu_custom_call.1} parent=35 // pred_region
        %s699 = smul.u32 32, %s15
      $region40: #{tpu_custom_call.1} parent=35 // pred_fallthru
        _
    $region36: #{tpu_custom_call.1} parent=5 // pred_fallthru
      _
    %p700 = scmp.le.s32.totalorder 2, %s10
    // Predicated region
    $region41: #{tpu_custom_call.1} parent=5 // pred_check
      %p701 = pneg %p700
    $region42: #{tpu_custom_call.1} parent=5 // pred_check_branch
      %703 = sbr.rel (%p701) target = $region44
    $region43: #{tpu_custom_call.1} parent=5 // pred_region
      %s704 = ssub.s32 %s10, 2
      // Predicated region
      $region45: #{tpu_custom_call.1} parent=43 // pred_check
        %p705 = pneg %p128
      $region46: #{tpu_custom_call.1} parent=43 // pred_check_branch
        %707 = sbr.rel (%p705) target = $region48
      $region47: #{tpu_custom_call.1} parent=43 // pred_region
        %s708 = smul.u32 32, %s16
        %p709 = scmp.lt.s32.totalorder %s708, 63
        %s710 = scalar_select %p709, %s708, 63
        %s711 = smul.addr %s710, 8
        %s712 = scalar_lea.vmem %s4, %s711
      $region48: #{tpu_custom_call.1} parent=43 // pred_fallthru
        _
    $region44: #{tpu_custom_call.1} parent=5 // pred_fallthru
      _
  $region6: #{tpu_custom_call.1} parent=0 // loop_footer
    %s14 = sadd.s32 1, %s10
  $region7: #{tpu_custom_call.1} parent=0 // loop_footer_branch
    %9 = sbr.rel target = $region3
  $region8: #{tpu_custom_call.1} parent=0 // loop_exit
    _

</llo_original>
